<compile_context>
chip_gen: v7x
topology: tpu7x:2x2x1
jax: 0.10.0
libtpu: 0.0.40
codegen_flags: <defaults>
</compile_context>

<pallas_src>
import functools

import numpy as np
import jax
import jax.numpy as jnp
from jax.experimental import pallas as pl
from jax.experimental.pallas import tpu as pltpu


def _distill_kernel(s_tab_ref,                  # scalar prefetch (SMEM, unused in body)
                    teacher_ref, student_ref,   # (TB, D) input blocks
                    out_ref,                    # (8, 128) per-teacher-chunk accumulator
                    q_ref,                      # (TB, D) f32 cached teacher softmax
                    *, inv_teacher_temp, inv_student_temp):
    bt = pl.program_id(1)   # batch tile
    v = pl.program_id(2)    # student-crop index within this teacher chunk

    @pl.when(jnp.logical_and(bt == 0, v == 0))
    def _init():
        out_ref[...] = jnp.zeros_like(out_ref)

    # Teacher softmax is shared by every student crop of this (chunk, batch-tile)
    # pair: recompute only when the inner student axis restarts.
    @pl.when(v == 0)
    def _teacher_softmax():
        t = teacher_ref[...].astype(jnp.float32) * inv_teacher_temp
        t_max = jnp.max(t, axis=-1, keepdims=True)
        t_exp = jnp.exp(t - t_max)
        inv_den = pl.reciprocal(jnp.sum(t_exp, axis=-1, keepdims=True))
        q_ref[...] = t_exp * inv_den            # rows sum to 1

    q = q_ref[...]

    # sum_d(-q_d * log_softmax(s)_d) = logsumexp(s) - sum_d(q_d * s_d)
    s = student_ref[...].astype(jnp.float32) * inv_student_temp
    s_max = jnp.max(s, axis=-1, keepdims=True)
    lse = s_max + jnp.log(jnp.sum(jnp.exp(s - s_max), axis=-1, keepdims=True))
    loss_rows = lse - jnp.sum(q * s, axis=-1, keepdims=True)       # (TB, 1)

    # accumulate raw row sums; 1/(B * n_pairs) is applied once on the host.
    out_ref[...] += jnp.sum(loss_rows)


def _vmem_budget_bytes():
    # generation-aware budget: use ~1/4 of physical VMEM for the working set so
    # double-buffering + compiler scratch keep headroom (64 MiB on v7x!).
    try:
        return int(pltpu.get_tpu_info().vmem_capacity_bytes) // 4
    except Exception:
        return 16 * 1024 * 1024


def _choose_batch_tile(B, D, in_bytes, budget_bytes):
    # rough per-row cost: teacher + student blocks double-buffered (2 * 2 * in)
    # plus the f32 teacher-softmax cache and ~4 f32 working temporaries.
    per_row = D * (2 * 2 * in_bytes + 5 * 4)
    tb = min(B, max(8, budget_bytes // max(per_row, 1)))
    tb = (tb // 8) * 8
    if tb >= B:
        return B
    while tb > 8 and B % tb != 0:
        tb -= 8
    return tb if B % tb == 0 else B


def distill_loss_pallas(student_output, teacher_output, temp, student_temp,
                        ncrops, batch_tile=None):
    total_s, D = student_output.shape
    total_t, Dt = teacher_output.shape
    assert D == Dt
    assert ncrops >= 2
    assert total_s % ncrops == 0
    B = total_s // ncrops
    assert total_t == 2 * B, "teacher output must hold 2 crops"
    # TODO(synk): pad the batch rows instead of asserting for B % 8 != 0.
    assert B % 8 == 0, "batch-per-crop must be a multiple of 8"

    in_bytes = int(np.dtype(student_output.dtype).itemsize)
    if batch_tile is None:
        batch_tile = _choose_batch_tile(B, D, in_bytes, _vmem_budget_bytes())
    TB = int(batch_tile)
    assert B % TB == 0 and TB % 8 == 0
    n_bt = B // TB
    nv = ncrops - 1
    n_pairs = 2 * nv

    # flat table: for teacher chunk iq, the nv student crops v != iq (iq-major)
    s_tab = jnp.array([v for iq in range(2) for v in range(ncrops) if v != iq],
                      dtype=jnp.int32)

    kernel = functools.partial(
        _distill_kernel,
        inv_teacher_temp=float(1.0 / temp),
        inv_student_temp=float(1.0 / student_temp))

    # only raise the scoped VMEM limit when the working set actually needs it
    need = 4 * TB * D * in_bytes + 2 * TB * D * 4 + (1 << 20)
    cp_kwargs = {}
    if need > (16 << 20):
        cp_kwargs["vmem_limit_bytes"] = int(min(need * 3 // 2,
                                                _vmem_budget_bytes() * 3))

    out = pl.pallas_call(
        kernel,
        out_shape=jax.ShapeDtypeStruct((16, 128), jnp.float32),
        grid_spec=pltpu.PrefetchScalarGridSpec(
            num_scalar_prefetch=1,
            grid=(2, n_bt, nv),
            in_specs=[
                # teacher chunk iq, batch tile bt
                pl.BlockSpec((TB, D),
                             lambda iq, bt, v, tab: (iq * n_bt + bt, 0)),
                # student crop selected via the prefetched pair table
                pl.BlockSpec((TB, D),
                             lambda iq, bt, v, tab:
                             (tab[iq * nv + v] * n_bt + bt, 0)),
            ],
            # lane-dense partial-sum slab: rows 0:8 -> teacher chunk 0,
            # rows 8:16 -> teacher chunk 1 (each block broadcast-filled).
            out_specs=pl.BlockSpec((8, 128), lambda iq, bt, v, tab: (iq, 0)),
            scratch_shapes=[pltpu.VMEM((TB, D), jnp.float32)],
        ),
        compiler_params=pltpu.CompilerParams(
            dimension_semantics=("parallel", "arbitrary", "arbitrary"),
            **cp_kwargs),
    )(s_tab, teacher_output, student_output)

    raw = out[0, 0] + out[8, 0]
    return raw / (B * n_pairs)


class DistillLoss:
    """JAX/Pallas port of the PyTorch DistillLoss module."""

    def __init__(self, warmup_teacher_temp_epochs, nepochs, ncrops=2,
                 warmup_teacher_temp=0.07, teacher_temp=0.04, student_temp=0.1):
        self.student_temp = student_temp
        self.ncrops = ncrops
        self.teacher_temp_schedule = np.concatenate((
            np.linspace(warmup_teacher_temp, teacher_temp,
                        warmup_teacher_temp_epochs),
            np.ones(nepochs - warmup_teacher_temp_epochs) * teacher_temp))

    def __call__(self, student_output, teacher_output, epoch, batch_tile=None):
        temp = float(self.teacher_temp_schedule[epoch])
        return distill_loss_pallas(student_output, teacher_output, temp,
                                   self.student_temp, self.ncrops,
                                   batch_tile=batch_tile)


def distill_loss_ref(student_output, teacher_output, epoch, schedule,
                     student_temp, ncrops):
    """Pure-JAX reference (mirrors the PyTorch forward)."""
    student_out = student_output / student_temp
    s_chunks = jnp.split(student_out, ncrops, axis=0)
    temp = schedule[epoch]
    teacher_out = jax.nn.softmax(teacher_output / temp, axis=-1)
    t_chunks = jnp.split(teacher_out, 2, axis=0)
    total, n = 0.0, 0
    for iq, q in enumerate(t_chunks):
        for v in range(len(s_chunks)):
            if v == iq:
                continue
            loss = jnp.sum(-q * jax.nn.log_softmax(s_chunks[v], axis=-1),
                           axis=-1)
            total = total + loss.mean()
            n += 1
    return total / n


if __name__ == "__main__":
    key = jax.random.PRNGKey(0)

    def check(ncrops, B, D, epoch, batch_tile=None):
        k_s, k_t = jax.random.split(jax.random.fold_in(key, ncrops * 1000 + B))
        student_output = jax.random.normal(k_s, (ncrops * B, D), jnp.float32)
        teacher_output = jax.random.normal(k_t, (2 * B, D), jnp.float32)
        mod = DistillLoss(warmup_teacher_temp_epochs=5, nepochs=20,
                          ncrops=ncrops)
        out = jax.block_until_ready(
            mod(student_output, teacher_output, epoch, batch_tile=batch_tile))
        ref = jax.block_until_ready(
            distill_loss_ref(student_output, teacher_output, epoch,
                             mod.teacher_temp_schedule, mod.student_temp,
                             ncrops))
        assert np.allclose(np.asarray(out), np.asarray(ref),
                           rtol=1e-5, atol=1e-5), (
            f"mismatch (ncrops={ncrops}, B={B}, D={D}): "
            f"pallas={out} ref={ref}")

    # base case (same toy config as before)
    check(ncrops=2, B=8, D=32, epoch=3)
    # exercises the cached-teacher-softmax path and explicit batch tiling
    check(ncrops=4, B=16, D=128, epoch=3, batch_tile=8)

    print("KERNEL_OK")
</pallas_src>

<mosaic_0001>
module attributes {stable_mosaic.version = 11 : i64} {
  func.func @_distill_kernel(%arg0: i32, %arg1: i32, %arg2: i32, %arg3: memref<2xi32, #tpu.memory_space<smem>>, %arg4: memref<8x32xf32, #tpu.memory_space<vmem>>, %arg5: memref<8x32xf32, #tpu.memory_space<vmem>>, %arg6: memref<8x128xf32, #tpu.memory_space<vmem>>, %arg7: memref<8x32xf32, #tpu.memory_space<vmem>>) attributes {dimension_semantics = [#tpu.dimension_semantics<parallel>, #tpu.dimension_semantics<arbitrary>, #tpu.dimension_semantics<arbitrary>], iteration_bounds = array<i64: 2, 1, 1>, scalar_prefetch = 1 : i64, scratch_operands = 1 : i64, tpu.core_type = #tpu.core_type<tc>, window_params = [{transform_indices = @transform_0, window_bounds = array<i64: 8, 32>}, {transform_indices = @transform_1, window_bounds = array<i64: 8, 32>}, {transform_indices = @transform_2, window_bounds = array<i64: 8, 128>}]} {
    %c0_i32 = arith.constant 0 : i32
    %0 = arith.cmpi eq, %arg1, %c0_i32 : i32
    %c0_i32_0 = arith.constant 0 : i32
    %1 = arith.cmpi eq, %arg2, %c0_i32_0 : i32
    %2 = arith.andi %0, %1 : i1
    %3 = arith.extui %2 : i1 to i32
    %c0_i32_1 = arith.constant 0 : i32
    %4 = arith.cmpi ne, %3, %c0_i32_1 : i32
    scf.if %4 {
      %cst_15 = arith.constant 0.000000e+00 : f32
      %33 = vector.broadcast %cst_15 : f32 to vector<8x128xf32>
      %c0_16 = arith.constant 0 : index
      %c0_17 = arith.constant 0 : index
      %34 = vector.load %arg6[%c0_16, %c0_17] : memref<8x128xf32, #tpu.memory_space<vmem>>, vector<8x128xf32>
      tpu.vector_store %arg6[%c0_16, %c0_17], %33 {strides = array<i32>} : memref<8x128xf32, #tpu.memory_space<vmem>>, vector<8x128xf32>,
    } else {
    }
    %c0_i32_2 = arith.constant 0 : i32
    %5 = arith.cmpi eq, %arg2, %c0_i32_2 : i32
    %6 = arith.extui %5 : i1 to i32
    %c0_i32_3 = arith.constant 0 : i32
    %7 = arith.cmpi ne, %6, %c0_i32_3 : i32
    scf.if %7 {
      %c0_15 = arith.constant 0 : index
      %c0_16 = arith.constant 0 : index
      %33 = vector.load %arg4[%c0_15, %c0_16] : memref<8x32xf32, #tpu.memory_space<vmem>>, vector<8x32xf32>
      %cst_17 = arith.constant 21.0526314 : f32
      %34 = vector.broadcast %cst_17 : f32 to vector<8x32xf32>
      %35 = arith.mulf %33, %34 : vector<8x32xf32>
      %cst_18 = arith.constant dense<0xFF800000> : vector<8xf32>
      %36 = vector.multi_reduction <maximumf>, %35, %cst_18 [1] : vector<8x32xf32> to vector<8xf32>
      %37 = vector.shape_cast %36 : vector<8xf32> to vector<8x1xf32>
      %38 = vector.broadcast %37 : vector<8x1xf32> to vector<8x32xf32>
      %39 = arith.subf %35, %38 : vector<8x32xf32>
      %40 = math.exp %39 : vector<8x32xf32>
      %cst_19 = arith.constant dense<0.000000e+00> : vector<8xf32>
      %41 = vector.multi_reduction <add>, %40, %cst_19 [1] : vector<8x32xf32> to vector<8xf32>
      %42 = vector.shape_cast %41 : vector<8xf32> to vector<8x1xf32>
      %43 = tpu.reciprocal %42 : vector<8x1xf32> -> vector<8x1xf32>
      %44 = vector.broadcast %43 : vector<8x1xf32> to vector<8x32xf32>
      %45 = arith.mulf %40, %44 : vector<8x32xf32>
      %c0_20 = arith.constant 0 : index
      %c0_21 = arith.constant 0 : index
      %46 = vector.load %arg7[%c0_20, %c0_21] : memref<8x32xf32, #tpu.memory_space<vmem>>, vector<8x32xf32>
      tpu.vector_store %arg7[%c0_20, %c0_21], %45 {strides = array<i32>} : memref<8x32xf32, #tpu.memory_space<vmem>>, vector<8x32xf32>,
    } else {
    }
    %c0 = arith.constant 0 : index
    %c0_4 = arith.constant 0 : index
    %8 = vector.load %arg7[%c0, %c0_4] : memref<8x32xf32, #tpu.memory_space<vmem>>, vector<8x32xf32>
    %c0_5 = arith.constant 0 : index
    %c0_6 = arith.constant 0 : index
    %9 = vector.load %arg5[%c0_5, %c0_6] : memref<8x32xf32, #tpu.memory_space<vmem>>, vector<8x32xf32>
    %cst = arith.constant 1.000000e+01 : f32
    %10 = vector.broadcast %cst : f32 to vector<8x32xf32>
    %11 = arith.mulf %9, %10 : vector<8x32xf32>
    %cst_7 = arith.constant dense<0xFF800000> : vector<8xf32>
    %12 = vector.multi_reduction <maximumf>, %11, %cst_7 [1] : vector<8x32xf32> to vector<8xf32>
    %13 = vector.shape_cast %12 : vector<8xf32> to vector<8x1xf32>
    %14 = vector.broadcast %13 : vector<8x1xf32> to vector<8x32xf32>
    %15 = arith.subf %11, %14 : vector<8x32xf32>
    %16 = math.exp %15 : vector<8x32xf32>
    %cst_8 = arith.constant dense<0.000000e+00> : vector<8xf32>
    %17 = vector.multi_reduction <add>, %16, %cst_8 [1] : vector<8x32xf32> to vector<8xf32>
    %18 = vector.shape_cast %17 : vector<8xf32> to vector<8x1xf32>
    %19 = math.log %18 : vector<8x1xf32>
    %20 = arith.addf %13, %19 : vector<8x1xf32>
    %21 = arith.mulf %8, %11 : vector<8x32xf32>
    %cst_9 = arith.constant dense<0.000000e+00> : vector<8xf32>
    %22 = vector.multi_reduction <add>, %21, %cst_9 [1] : vector<8x32xf32> to vector<8xf32>
    %23 = vector.shape_cast %22 : vector<8xf32> to vector<8x1xf32>
    %24 = arith.subf %20, %23 : vector<8x1xf32>
    %c0_10 = arith.constant 0 : index
    %c0_11 = arith.constant 0 : index
    %25 = vector.load %arg6[%c0_10, %c0_11] : memref<8x128xf32, #tpu.memory_space<vmem>>, vector<8x128xf32>
    %26 = vector.shape_cast %24 : vector<8x1xf32> to vector<1x8x1xf32>
    %cst_12 = arith.constant dense<0.000000e+00> : vector<1xf32>
    %27 = vector.multi_reduction <add>, %26, %cst_12 [1, 2] : vector<1x8x1xf32> to vector<1xf32>
    %28 = vector.shape_cast %27 : vector<1xf32> to vector<1x1x1xf32>
    %29 = vector.extract %28[0, 0, 0] : f32 from vector<1x1x1xf32>
    %30 = vector.broadcast %29 : f32 to vector<8x128xf32>
    %31 = arith.addf %25, %30 : vector<8x128xf32>
    %c0_13 = arith.constant 0 : index
    %c0_14 = arith.constant 0 : index
    %32 = vector.load %arg6[%c0_13, %c0_14] : memref<8x128xf32, #tpu.memory_space<vmem>>, vector<8x128xf32>
    tpu.vector_store %arg6[%c0_13, %c0_14], %31 {strides = array<i32>} : memref<8x128xf32, #tpu.memory_space<vmem>>, vector<8x128xf32>,
    return
  }
  func.func @transform_0(%arg0: i32, %arg1: i32, %arg2: i32, %arg3: memref<2xi32, #tpu.memory_space<smem>>) -> (i32, i32) {
    %c1_i32 = arith.constant 1 : i32
    %0 = arith.muli %arg0, %c1_i32 : i32
    %1 = arith.addi %0, %arg1 : i32
    %c0_i32 = arith.constant 0 : i32
    %c0_i32_0 = arith.constant 0 : i32
    return %1, %c0_i32 : i32, i32
  }
  func.func @transform_1(%arg0: i32, %arg1: i32, %arg2: i32, %arg3: memref<2xi32, #tpu.memory_space<smem>>) -> (i32, i32) {
    %c1_i32 = arith.constant 1 : i32
    %0 = arith.muli %arg0, %c1_i32 : i32
    %1 = arith.addi %0, %arg2 : i32
    %2 = arith.index_cast %1 : i32 to index
    %3 = memref.load %arg3[%2] : memref<2xi32, #tpu.memory_space<smem>>
    %c1_i32_0 = arith.constant 1 : i32
    %4 = arith.muli %3, %c1_i32_0 : i32
    %5 = arith.addi %4, %arg1 : i32
    %c0_i32 = arith.constant 0 : i32
    %c0_i32_1 = arith.constant 0 : i32
    return %5, %c0_i32 : i32, i32
  }
  func.func @transform_2(%arg0: i32, %arg1: i32, %arg2: i32, %arg3: memref<2xi32, #tpu.memory_space<smem>>) -> (i32, i32) {
    %c0_i32 = arith.constant 0 : i32
    %c0_i32_0 = arith.constant 0 : i32
    return %arg0, %c0_i32 : i32, i32
  }
}

</mosaic_0001>

<llo_original>
// kernel: tpu_custom_call.1
$region0: #{tpu_custom_call.1}
  #allocation0 [shape = 'u32[]', space=smem, size = 0x4, offset = 0x4, fixed_abs, tag = 'smem constant byte address 0x4 - core index']
  #allocation1 [shape = 'u32[144,128]{1,0:T(1,128)}', space=vmem, size = 0x12000, scoped, tag = 'internal scratch']
  #allocation2 [shape = 'f32[8,32]{1,0:T(8,128)}', space=vmem, size = 0x1000, scoped, tag = 'scratch operand']
  #allocation3 [shape = 's32[1]{0}', space=sflag, size = 0x4, scoped, tag = 'scoped memory for tpu_custom_call.1']
  #allocation4 [shape = 'u8[512]{0}', space=smem, size = 0x200, scoped, tag = 'prefetched SMEM operand 0']
  %s0 = inlined_call_operand.hbm [shape: s32[2], index: 0, kind: input, shape index: {}]
  %s1 = inlined_call_operand.hbm [shape: f32[16,32], index: 1, kind: input, shape index: {}]
  %s2 = inlined_call_operand.hbm [shape: f32[16,32], index: 2, kind: input, shape index: {}]
  %s3 = inlined_call_operand.hbm [shape: f32[16,128], index: 3, kind: output, shape index: {}]
  %s4 = sld [smem:[#allocation0]]
  $region57: #{tpu_custom_call.1} parent=0
    _
  %s6 = ssub.s32 1, %s4
  %s7 = scalar_select 0, %s6, %s4
  %9 = dma.hbm_to_smem %s0, 16, [#allocation4], [#allocation3]
  %10 = dma.done [#allocation3], 16
  %11 = sfence
  $region1: #{tpu_custom_call.1} parent=0
    #allocation5 [shape = 'u8[8192]{0}', space=vmem, size = 0x2000, scoped, tag = 'input window, operand 1']
    #allocation6 [shape = 's32[2]{0}', space=sflag, size = 0x8, scoped, tag = 'scoped memory for tpu_custom_call.1']
    #allocation7 [shape = 's32[2]{0}', space=sflag, size = 0x8, scoped, tag = 'scoped memory for tpu_custom_call.1']
    #allocation8 [shape = 'u8[8192]{0}', space=vmem, size = 0x2000, scoped, tag = 'input window, operand 2']
    #allocation9 [shape = 's32[2]{0}', space=sflag, size = 0x8, scoped, tag = 'scoped memory for tpu_custom_call.1']
    #allocation10 [shape = 'u8[8192]{0}', space=vmem, size = 0x2000, scoped, tag = 'output window, operand 0']
    %12 = vsyncpa [#allocation6], 0
    %s13 = scalar_lea.sflag [#allocation6], 1
    %14 = vsyncpa %s13, 0
    %15 = vsyncpa [#allocation9], 0
    %s16 = scalar_lea.sflag [#allocation9], 1
    %17 = vsyncpa %s16, 0
    %18 = vsyncpa [#allocation7], 0
    %s19 = scalar_lea.sflag [#allocation7], 1
    %20 = vsyncpa %s19, 0
    loop: start=0, step=1, limit=4
    $region2: #{tpu_custom_call.1} parent=1 // loop_pre_header
      _
    $region3: #{tpu_custom_call.1} parent=1 // loop_header
      %s22 = sphi 0, %s26
      %p23 = scmp.ge.s32.totalorder %s22, 4
      %s29 = sphi 0, %s48
      %s30 = sphi 0, %s44
      %s31 = sphi 0, %s40
      %s32 = sphi 0, %s29
      %s33 = sphi 0, %s30
      %s34 = sphi 0, %s31
      %s35 = sphi 0, %s32
      %s36 = sphi 0, %s33
      %s37 = sphi 0, %s34
      %s53 = sphi 0, %s55
      %s56 = sphi 0, %s53
      %s57 = sphi 0, %s56
      %s73 = sphi 0, %s57
      %s85 = sphi 0, %s87
      %s88 = sphi 0, %s85
      %s89 = sphi 0, %s88
      %s105 = sphi 0, %s89
      %s111 = sphi 0, %s113
      %s114 = sphi 0, %s111
      %s115 = sphi 0, %s114
      %s131 = sphi 0, %s115
    $region4: #{tpu_custom_call.1} parent=1 // loop_header_branch
      %25 = sbr.rel (%p23) target = $region8
    $region5: #{tpu_custom_call.1} parent=1 // loop_body
      %s27 = ssub.s32 %s22, 1
      %s28 = ssub.s32 %s22, 2
      %s38 = sadd.s32 1, %s31
      %p39 = scmp.ge.s32.totalorder %s38, 1
      %s40 = scalar_select %p39, 0, %s38
      %s41 = sadd.s32 1, %s30
      %s42 = scalar_select %p39, %s41, %s30
      %p43 = scmp.ge.s32.totalorder %s42, 1
      %s44 = scalar_select %p43, 0, %s42
      %s45 = sadd.s32 1, %s29
      %s46 = scalar_select %p43, %s45, %s29
      %p47 = scmp.ge.s32.totalorder %s46, 2
      %s48 = scalar_select %p47, 0, %s46
      %s49 = sadd.s32 %s29, %s30
      %s50 = sadd.s32 %s48, %s44
      %s51 = ssub.s32 %s49, %s50
      %p52 = scmp.eq.s32.totalorder %s51, 0
      %s54 = sadd.s32 %s53, 1
      %s55 = scalar_select %p52, %s53, %s54
      %p58 = pneg %p52
      %p59 = scmp.eq.s32.totalorder %s22, 1
      %p60 = por %p58, %p59
      %p61 = scmp.ne.s32.totalorder %s53, %s56
      %p62 = scmp.eq.s32.totalorder %s22, 0
      %p63 = por %p61, %p62
      %p64 = scmp.ne.s32.totalorder %s53, %s56
      %p65 = scmp.eq.s32.totalorder %s27, 1
      %p66 = por %p64, %p65
      %p67 = scmp.ne.s32.totalorder %s56, %s57
      %p68 = scmp.eq.s32.totalorder %s27, 0
      %p69 = por %p67, %p68
      %p70 = scmp.ne.s32.totalorder %s56, %s57
      %p71 = scmp.eq.s32.totalorder %s28, 1
      %p72 = por %p70, %p71
      %p74 = scmp.ne.s32.totalorder %s57, %s73
      %p75 = scmp.eq.s32.totalorder %s28, 0
      %p76 = por %p74, %p75
      %s77 = sadd.s32 %s29, %s31
      %s78 = sld [smem:[#allocation4 + %s77]]
      %s79 = sadd.s32 %s78, %s30
      %s80 = sadd.s32 %s48, %s40
      %s81 = sld [smem:[#allocation4 + %s80]]
      %s82 = sadd.s32 %s81, %s44
      %s83 = ssub.s32 %s79, %s82
      %p84 = scmp.eq.s32.totalorder %s83, 0
      %s86 = sadd.s32 %s85, 1
      %s87 = scalar_select %p84, %s85, %s86
      %p90 = pneg %p84
      %p91 = scmp.eq.s32.totalorder %s22, 1
      %p92 = por %p90, %p91
      %p93 = scmp.ne.s32.totalorder %s85, %s88
      %p94 = scmp.eq.s32.totalorder %s22, 0
      %p95 = por %p93, %p94
      %p96 = scmp.ne.s32.totalorder %s85, %s88
      %p97 = scmp.eq.s32.totalorder %s27, 1
      %p98 = por %p96, %p97
      %p99 = scmp.ne.s32.totalorder %s88, %s89
      %p100 = scmp.eq.s32.totalorder %s27, 0
      %p101 = por %p99, %p100
      %p102 = scmp.ne.s32.totalorder %s88, %s89
      %p103 = scmp.eq.s32.totalorder %s28, 1
      %p104 = por %p102, %p103
      %p106 = scmp.ne.s32.totalorder %s89, %s105
      %p107 = scmp.eq.s32.totalorder %s28, 0
      %p108 = por %p106, %p107
      %s109 = ssub.s32 %s29, %s48
      %p110 = scmp.eq.s32.totalorder %s109, 0
      %s112 = sadd.s32 %s111, 1
      %s113 = scalar_select %p110, %s111, %s112
      %p116 = pneg %p110
      %p117 = scmp.eq.s32.totalorder %s22, 1
      %p118 = por %p116, %p117
      %p119 = scmp.ne.s32.totalorder %s111, %s114
      %p120 = scmp.eq.s32.totalorder %s22, 0
      %p121 = por %p119, %p120
      %p122 = scmp.ne.s32.totalorder %s111, %s114
      %p123 = scmp.eq.s32.totalorder %s27, 1
      %p124 = por %p122, %p123
      %p125 = scmp.ne.s32.totalorder %s114, %s115
      %p126 = scmp.eq.s32.totalorder %s27, 0
      %p127 = por %p125, %p126
      %p128 = scmp.ne.s32.totalorder %s114, %s115
      %p129 = scmp.eq.s32.totalorder %s28, 1
      %p130 = por %p128, %p129
      %p132 = scmp.ne.s32.totalorder %s115, %s131
      %p133 = scmp.eq.s32.totalorder %s28, 0
      %p134 = por %p132, %p133
      %p135 = scmp.le.s32.totalorder 1, %s22
      %p136 = scmp.lt.s32.totalorder %s22, 3
      %p137 = pnand %p135, %p136
      %p138 = pneg %p137
      // Predicated region
      $region9: #{tpu_custom_call.1} parent=5 // pred_check
        _
      $region10: #{tpu_custom_call.1} parent=5 // pred_check_branch
        %140 = sbr.rel (%p137) target = $region12
      $region11: #{tpu_custom_call.1} parent=5 // pred_region
        %s141 = ssub.s32 %s22, 1
      $region12: #{tpu_custom_call.1} parent=5 // pred_fallthru
        _
      %p142 = scmp.lt.s32.totalorder %s22, 2
      // Predicated region
      $region13: #{tpu_custom_call.1} parent=5 // pred_check
        %p143 = pneg %p142
      $region14: #{tpu_custom_call.1} parent=5 // pred_check_branch
        %145 = sbr.rel (%p143) target = $region16
      $region15: #{tpu_custom_call.1} parent=5 // pred_region
        // Predicated region
        $region17: #{tpu_custom_call.1} parent=15 // pred_check
          %p146 = pneg %p63
        $region18: #{tpu_custom_call.1} parent=15 // pred_check_branch
          %148 = sbr.rel (%p146) target = $region20
        $region19: #{tpu_custom_call.1} parent=15 // pred_region
          %s149 = sand.u32 %s53, 1
          %s150 = scalar_lea.sflag [#allocation6], %s149
          %s151 = sand.u32 %s53, 1
          %s152 = smul.addr %s151, 8
          %s153 = scalar_lea.vmem [#allocation5], %s152
          %s154 = sadd.s32 %s29, %s30
          %s156 = ssub.s32 128, 128
          %157 = vsyncadd %s150, %s156
          %s158 = smul.addr %s154, 128
          %s159 = scalar_lea.hbm %s1, %s158
          %s161 = sshll.u32 %s153, 4
          %s162 = int_to_ptr.vmem [resolvable:$true] %s161
          %164 = dma.hbm_to_vmem [thread:$0]  %s159, 128, %s162, %s150
        $region20: #{tpu_custom_call.1} parent=15 // pred_fallthru
          _
        // Predicated region
        $region21: #{tpu_custom_call.1} parent=15 // pred_check
          %p165 = pneg %p95
        $region22: #{tpu_custom_call.1} parent=15 // pred_check_branch
          %167 = sbr.rel (%p165) target = $region24
        $region23: #{tpu_custom_call.1} parent=15 // pred_region
          %s168 = sand.u32 %s85, 1
          %s169 = scalar_lea.sflag [#allocation9], %s168
          %s170 = sand.u32 %s85, 1
          %s171 = smul.addr %s170, 8
          %s172 = scalar_lea.vmem [#allocation8], %s171
          %s173 = sadd.s32 %s29, %s31
          %s174 = sld [smem:[#allocation4 + %s173]]
          %s175 = sadd.s32 %s174, %s30
          %s177 = ssub.s32 128, 128
          %178 = vsyncadd %s169, %s177
          %s179 = smul.addr %s175, 128
          %s180 = scalar_lea.hbm %s2, %s179
          %s182 = sshll.u32 %s172, 4
          %s183 = int_to_ptr.vmem [resolvable:$true] %s182
          %185 = dma.hbm_to_vmem [thread:$0]  %s180, 128, %s183, %s169
        $region24: #{tpu_custom_call.1} parent=15 // pred_fallthru
          _
      $region16: #{tpu_custom_call.1} parent=5 // pred_fallthru
        _
      %p186 = scmp.le.s32.totalorder 1, %s22
      %p187 = scmp.lt.s32.totalorder %s22, 3
      %p188 = pnand %p186, %p187
      %p189 = pneg %p188
      // Predicated region
      $region25: #{tpu_custom_call.1} parent=5 // pred_check
        _
      $region26: #{tpu_custom_call.1} parent=5 // pred_check_branch
        %191 = sbr.rel (%p188) target = $region28
      $region27: #{tpu_custom_call.1} parent=5 // pred_region
        %s192 = ssub.s32 %s22, 1
        %s193 = sand.u32 %s56, 1
        %s194 = scalar_lea.sflag [#allocation6], %s193
        %s195 = sand.u32 %s56, 1
        %s196 = smul.addr %s195, 8
        %s197 = scalar_lea.vmem [#allocation5], %s196
        // Predicated region
        $region29: #{tpu_custom_call.1} parent=27 // pred_check
          %p198 = pneg %p69
        $region30: #{tpu_custom_call.1} parent=27 // pred_check_branch
          %200 = sbr.rel (%p198) target = $region32
        $region31: #{tpu_custom_call.1} parent=27 // pred_region
          %201 = dma.done %s194, 128
        $region32: #{tpu_custom_call.1} parent=27 // pred_fallthru
          _
        %s202 = sand.u32 %s88, 1
        %s203 = scalar_lea.sflag [#allocation9], %s202
        %s204 = sand.u32 %s88, 1
        %s205 = smul.addr %s204, 8
        %s206 = scalar_lea.vmem [#allocation8], %s205
        // Predicated region
        $region33: #{tpu_custom_call.1} parent=27 // pred_check
          %p207 = pneg %p101
        $region34: #{tpu_custom_call.1} parent=27 // pred_check_branch
          %209 = sbr.rel (%p207) target = $region36
        $region35: #{tpu_custom_call.1} parent=27 // pred_region
          %210 = dma.done %s203, 128
        $region36: #{tpu_custom_call.1} parent=27 // pred_fallthru
          _
        %s211 = sand.u32 %s56, 1
        %s212 = scalar_lea.sflag [#allocation6], %s211
        %s213 = sand.u32 %s56, 1
        %s214 = smul.addr %s213, 8
        %s215 = scalar_lea.vmem [#allocation5], %s214
        %p216 = pneg %p69
        %p217 = pneg %p66
        %s218 = sand.u32 %s88, 1
        %s219 = scalar_lea.sflag [#allocation9], %s218
        %s220 = sand.u32 %s88, 1
        %s221 = smul.addr %s220, 8
        %s222 = scalar_lea.vmem [#allocation8], %s221
        %p223 = pneg %p101
        %p224 = pneg %p98
        %p225 = pneg %p127
        %p226 = pneg %p124
        %s227 = sand.u32 %s114, 1
        %s228 = scalar_lea.sflag [#allocation7], %s227
        %s229 = sand.u32 %s114, 1
        %s230 = smul.addr %s229, 8
        %s231 = scalar_lea.vmem [#allocation10], %s230
        %s232 = sadd.s32 %s32, %s33
        %s233 = sadd.s32 %s32, %s34
        %s234 = sld [smem:[#allocation4 + %s233]]
        %s235 = sadd.s32 %s234, %s33
        %p236 = scmp.eq.s32.totalorder %s33, 0
        %p237 = scmp.eq.s32.totalorder %s34, 0
        %p238 = pnand %p236, %p237
        %p239 = pneg %p238
        // Predicated region
        $region37: #{tpu_custom_call.1} parent=27 // pred_check
          _
        $region38: #{tpu_custom_call.1} parent=27 // pred_check_branch
          %241 = sbr.rel (%p238) target = $region40
        $region39: #{tpu_custom_call.1} parent=27 // pred_region
          %242 = vst [vmem:[%s231] sm:$0xff] 0.0
        $region40: #{tpu_custom_call.1} parent=27 // pred_fallthru
          _
        // Predicated region
        $region41: #{tpu_custom_call.1} parent=27 // pred_check
          %p243 = pneg %p237
        $region42: #{tpu_custom_call.1} parent=27 // pred_check_branch
          %245 = sbr.rel (%p243) target = $region44
        $region43: #{tpu_custom_call.1} parent=27 // pred_region
          %v246 = vld [vmem:[%s197] sm:$0xff]
          %v247 = vmul.f32 %v246, 21.052631
          %vm248 = vcmask 261120
          %v249 = vsel %vm248, %v247, -inf
          %250 = vmax.xlane.f32.xlu0 %v249
          %v251 = vpop.xlane.xlu0 %250
          %v252 = vsub.f32 %v247, %v251
          %v253 = vmul.f32 %v252, 1.442695
          %v254 = vpow.pop %v253
          %v255 = vsel %vm248, %v254, 0.0
          %256 = vadd.xlane.f32.xlu0 %v255
          %v257 = vpop.xlane.xlu0 %256
          %v258 = vrcp.pop %v257
          %v259 = vmul.f32 %v254, %v258
          %260 = vst.msk [vmem:[#allocation2] sm:$0xff] %vm248, %v259
        $region44: #{tpu_custom_call.1} parent=27 // pred_fallthru
          _
        %v261 = vld [vmem:[#allocation2] sm:$0xff]
        %v262 = vld [vmem:[%s206] sm:$0xff]
        %v263 = vmul.f32 %v262, 10.0
        %vm264 = vcmask 261120
        %v265 = vsel %vm264, %v263, -inf
        %266 = vmax.xlane.f32.xlu0 %v265
        %v267 = vpop.xlane.xlu0 %266
        %v268 = vsub.f32 %v263, %v267
        %v269 = vmul.f32 %v268, 1.442695
        %v270 = vpow.pop %v269
        %v271 = vsel %vm264, %v270, 0.0
        %272 = vadd.xlane.f32.xlu0 %v271
        %v273 = vpop.xlane.xlu0 %272
        %v274 = vlog2.pop %v273
        %v275 = vmul.f32 %v274, 0.6931472
        %v276 = vadd.f32 %v267, %v275
        %v277 = vmul.f32 %v261, %v263
        %v278 = vsel %vm264, %v277, 0.0
        %279 = vadd.xlane.f32.xlu0 %v278
        %v280 = vpop.xlane.xlu0 %279
        %v281 = vsub.f32 %v276, %v280
        %v282 = vld [vmem:[%s231] sm:$0xff]
        %vm283 = vcmask 7168
        %v284 = vsel %vm283, %v281, 0.0
        %285 = vadd.xlane.f32.xlu0 %v284
        %v286 = vpop.xlane.xlu0 %285
        %v287 = vrot.slane %v286, 4
        %v288 = vadd.f32 %v286, %v287
        %v289 = vrot.slane %v288, 2
        %v290 = vadd.f32 %v288, %v289
        %v291 = vrot.slane %v290, 1
        %v292 = vadd.f32 %v290, %v291
        %s293 = vtos %v292
        %v294 = vstv %s293
        %v295 = vadd.f32 %v282, %v294
        %296 = vst [vmem:[%s231] sm:$0xff] %v295
        %s297 = sand.u32 %s114, 1
        %s298 = scalar_lea.sflag [#allocation7], %s297
        %s299 = sand.u32 %s114, 1
        %s300 = smul.addr %s299, 8
        %s301 = scalar_lea.vmem [#allocation10], %s300
        // Predicated region
        $region45: #{tpu_custom_call.1} parent=27 // pred_check
          %p302 = pneg %p124
        $region46: #{tpu_custom_call.1} parent=27 // pred_check_branch
          %304 = sbr.rel (%p302) target = $region48
        $region47: #{tpu_custom_call.1} parent=27 // pred_region
          %s306 = ssub.s32 128, 128
          %307 = vsyncadd %s298, %s306
          %s308 = smul.addr %s32, 128
          %s309 = scalar_lea.hbm %s3, %s308
          %s311 = sshll.u32 %s301, 4
          %s312 = int_to_ptr.vmem [resolvable:$true] %s311
          %314 = dma.vmem_to_hbm [thread:$0]  %s312, 128, %s309, %s298
        $region48: #{tpu_custom_call.1} parent=27 // pred_fallthru
          _
      $region28: #{tpu_custom_call.1} parent=5 // pred_fallthru
        _
      %p315 = scmp.le.s32.totalorder 2, %s22
      // Predicated region
      $region49: #{tpu_custom_call.1} parent=5 // pred_check
        %p316 = pneg %p315
      $region50: #{tpu_custom_call.1} parent=5 // pred_check_branch
        %318 = sbr.rel (%p316) target = $region52
      $region51: #{tpu_custom_call.1} parent=5 // pred_region
        %s319 = ssub.s32 %s22, 2
        // Predicated region
        $region53: #{tpu_custom_call.1} parent=51 // pred_check
          %p320 = pneg %p130
        $region54: #{tpu_custom_call.1} parent=51 // pred_check_branch
          %322 = sbr.rel (%p320) target = $region56
        $region55: #{tpu_custom_call.1} parent=51 // pred_region
          %s323 = sand.u32 %s115, 1
          %s324 = scalar_lea.sflag [#allocation7], %s323
          %s325 = sand.u32 %s115, 1
          %s326 = smul.addr %s325, 8
          %s327 = scalar_lea.vmem [#allocation10], %s326
          %328 = dma.done %s324, 128
        $region56: #{tpu_custom_call.1} parent=51 // pred_fallthru
          _
      $region52: #{tpu_custom_call.1} parent=5 // pred_fallthru
        _
    $region6: #{tpu_custom_call.1} parent=1 // loop_footer
      %s26 = sadd.s32 1, %s22
    $region7: #{tpu_custom_call.1} parent=1 // loop_footer_branch
      %21 = sbr.rel target = $region3
    $region8: #{tpu_custom_call.1} parent=1 // loop_exit
      _
    %329 = vsyncpa [#allocation6], 1
    %s330 = scalar_lea.sflag [#allocation6], 1
    %331 = vsyncpa %s330, 1
    %332 = vsyncpa [#allocation9], 1
    %s333 = scalar_lea.sflag [#allocation9], 1
    %334 = vsyncpa %s333, 1
    %335 = vsyncpa [#allocation7], 1
    %s336 = scalar_lea.sflag [#allocation7], 1
    %337 = vsyncpa %s336, 1

</llo_original>
